<compile_context>
chip_gen: v7x
topology: tpu7x:2x2x1
jax: 0.10.0
libtpu: 0.0.40
codegen_flags: <defaults>
</compile_context>

<pallas_src>
import functools

import jax
import jax.numpy as jnp
from jax import lax
from jax.experimental import pallas as pl
from jax.experimental.pallas import tpu as pltpu

_LANES = 128
_SUBLANES = 8
_MAX_TILE_ROWS = 1024    # (1024,128) f32 tile = 512 KiB; 2 inputs x 2 buffers +
                         # (8,128) accumulator ~2 MiB -> well inside every VMEM.


def _pow_static(x, gamma):
    """Specialize x**gamma at trace time (gamma is a Python float).

    Returns None when the factor is identically 1 (gamma == 0).
    Integer gammas -> square-and-multiply (VPU only); half-integer gammas ->
    one sqrt (single EUP push) plus VPU multiplies; else jnp.power fallback.
    """
    g = float(gamma)
    if g == 0.0:
        return None
    if g == 1.0:
        return x
    if g > 0.0 and (2.0 * g).is_integer():
        n2 = int(round(2.0 * g))           # x ** (n2 / 2)
        has_half = (n2 % 2) == 1
        n = n2 // 2
        result = None
        base = x
        k = n
        while k > 0:                        # square-and-multiply for x**n
            if k & 1:
                result = base if result is None else result * base
            k >>= 1
            if k:
                base = base * base
        if has_half:
            s = jnp.sqrt(x)
            result = s if result is None else result * s
        return result
    return jnp.power(x, jnp.float32(g))     # general fallback (exp/log on EUP)


def _asym_loss_kernel(pred_ref, tgt_ref, out_ref, acc_ref, *,
                      gamma_pos, gamma_neg, n_valid, tile_rows,
                      tiles_per_slice, has_pad, binary_target):
    c = pl.program_id(0)   # per-TensorCore slice (size 1 on single-TC chips)
    i = pl.program_id(1)   # reduction step within the slice

    @pl.when(i == 0)
    def _():
        acc_ref[...] = jnp.zeros_like(acc_ref)

    pred = pred_ref[...].astype(jnp.float32)
    tgt = tgt_ref[...].astype(jnp.float32)

    # Matches the PyTorch f32 reference: 1 - 1e-8 rounds to 1.0 in f32, so the
    # upper clamp is effectively a no-op (kept for exact spec parity).
    eps = jnp.float32(1e-8)
    pred = jnp.clip(pred, eps, 1.0 - eps)

    if binary_target:
        # Fast path for targets guaranteed to be exactly {0,1}: single log.
        is_pos = tgt > 0.5
        logp = jnp.log(jnp.where(is_pos, pred, 1.0 - pred))
        w_pos = _pow_static(1.0 - pred, gamma_pos)
        w_neg = _pow_static(pred, gamma_neg)
        if w_pos is None and w_neg is None:
            term = logp
        else:
            one = jnp.float32(1.0)
            wp = w_pos if w_pos is not None else one
            wn = w_neg if w_neg is not None else one
            term = logp * jnp.where(is_pos, wp, wn)
    else:
        pos = tgt * jnp.log(pred)
        w = _pow_static(1.0 - pred, gamma_pos)
        if w is not None:
            pos = pos * w
        neg = (1.0 - tgt) * jnp.log(1.0 - pred)
        w = _pow_static(pred, gamma_neg)
        if w is not None:
            neg = neg * w
        term = pos + neg

    def fold(t):
        # (tile_rows,128) -> (tile_rows//8, 8, 128) is layout-preserving; the
        # axis-0 sum is plain cross-vreg VPU adds into one (8,128) vreg.
        return t.reshape(tile_rows // _SUBLANES, _SUBLANES, _LANES).sum(axis=0)

    if has_pad:
        tile_row_base = (c * tiles_per_slice + i) * tile_rows
        # Tile is fully valid iff its last row index <= number of full rows.
        tile_is_clean = (tile_row_base + tile_rows) <= (n_valid // _LANES)

        @pl.when(tile_is_clean)
        def _():
            acc_ref[...] += fold(term)

        @pl.when(jnp.logical_not(tile_is_clean))
        def _():
            # Row-based validity mask (only on the tail tile(s)); no int32
            # element-index overflow even for huge inputs.
            row = lax.broadcasted_iota(jnp.int32, (tile_rows, _LANES), 0)
            lane = lax.broadcasted_iota(jnp.int32, (tile_rows, _LANES), 1)
            g_row = tile_row_base + row
            b_row = n_valid // _LANES      # static
            b_lane = n_valid % _LANES      # static
            valid = (g_row < b_row) | ((g_row == b_row) & (lane < b_lane))
            acc_ref[...] += fold(jnp.where(valid, term, 0.0))
    else:
        acc_ref[...] += fold(term)

    @pl.when(i == tiles_per_slice - 1)
    def _():
        out_ref[...] = acc_ref[...]


def _detect_num_tensorcores():
    """Best-effort TensorCore count for this chip. Conservative: only v7x -> 2."""
    try:
        kind = jax.devices()[0].device_kind.lower()
    except Exception:
        return 1
    if "v7" not in kind:
        return 1
    try:
        info = pltpu.get_tpu_info()
        for attr in ("num_cores", "core_count", "num_tensorcores",
                     "tensorcore_count", "cores_per_chip", "num_cores_per_chip"):
            v = getattr(info, attr, None)
            if isinstance(v, int) and v >= 1:
                return v
    except Exception:
        pass
    return 2


def asymmetric_loss(pred, target, gamma_pos=0.0, gamma_neg=0.0, *,
                    binary_target=False, max_tile_rows=_MAX_TILE_ROWS,
                    num_slices=None):
    assert pred.shape == target.shape
    n = int(pred.size)
    assert n > 0

    if num_slices is None:
        num_slices = _detect_num_tensorcores()
    num_slices = max(1, int(num_slices))

    # Inputs keep their original dtype (kernel upcasts in-register) so callers
    # holding bf16/int8/bool targets stream fewer HBM bytes.
    pred_flat = jnp.ravel(pred)
    tgt_flat = jnp.ravel(target)

    # Static tiling math (all Python ints).
    rows_needed = -(-n // _LANES)
    rows_per_slice = -(-rows_needed // num_slices)
    rows_per_slice = max(
        _SUBLANES, ((rows_per_slice + _SUBLANES - 1) // _SUBLANES) * _SUBLANES)
    tile_rows = min(int(max_tile_rows), rows_per_slice)
    tile_rows = max(_SUBLANES, (tile_rows // _SUBLANES) * _SUBLANES)
    tiles_per_slice = -(-rows_per_slice // tile_rows)
    rows_total = num_slices * tiles_per_slice * tile_rows
    n_pad = rows_total * _LANES
    pad = n_pad - n
    if pad:
        # Finite, NaN-free padding; contributions are zeroed by the in-kernel
        # tail mask (paid only on the tile(s) that overlap the pad).
        pred_flat = jnp.pad(pred_flat, (0, pad),
                            constant_values=jnp.asarray(0.5, pred_flat.dtype))
        tgt_flat = jnp.pad(tgt_flat, (0, pad))

    pred2d = pred_flat.reshape(rows_total, _LANES)
    tgt2d = tgt_flat.reshape(rows_total, _LANES)

    in_spec = pl.BlockSpec(
        (tile_rows, _LANES), lambda c, i: (c * tiles_per_slice + i, 0))
    out_spec = pl.BlockSpec(
        (None, _SUBLANES, _LANES), lambda c, i: (c, 0, 0))

    kernel = functools.partial(
        _asym_loss_kernel,
        gamma_pos=float(gamma_pos),
        gamma_neg=float(gamma_neg),
        n_valid=n,
        tile_rows=tile_rows,
        tiles_per_slice=tiles_per_slice,
        has_pad=bool(pad),
        binary_target=bool(binary_target),
    )

    if num_slices > 1:
        # Explicit per-core split of the leading grid axis on multi-TC chips.
        lead = getattr(pltpu, "CORE_PARALLEL", "parallel")
        semantics = (lead, "arbitrary")
    else:
        semantics = ("arbitrary", "arbitrary")

    partial_sums = pl.pallas_call(
        kernel,
        out_shape=jax.ShapeDtypeStruct(
            (num_slices, _SUBLANES, _LANES), jnp.float32),
        grid_spec=pltpu.PrefetchScalarGridSpec(
            num_scalar_prefetch=0,
            grid=(num_slices, tiles_per_slice),
            in_specs=[in_spec, in_spec],
            out_specs=out_spec,
            scratch_shapes=[pltpu.VMEM((_SUBLANES, _LANES), jnp.float32)],
        ),
        compiler_params=pltpu.CompilerParams(dimension_semantics=semantics),
    )(pred2d, tgt2d)

    # Single small cross-lane/sublane reduction of the per-slice partials.
    return -jnp.sum(partial_sums) / jnp.float32(n)


def _reference_loss(pred, target, gamma_pos=0.0, gamma_neg=0.0):
    eps = 1e-8
    pred = jnp.clip(pred.astype(jnp.float32), eps, 1.0 - eps)
    target = target.astype(jnp.float32)
    pos = target * jnp.log(pred) * jnp.power(1.0 - pred, gamma_pos)
    neg = (1.0 - target) * jnp.log(1.0 - pred) * jnp.power(pred, gamma_neg)
    return -jnp.mean(pos + neg)


if __name__ == "__main__":
    key = jax.random.PRNGKey(0)

    cases = [
        # shape,         gamma_pos, gamma_neg, target kind, wrapper kwargs
        ((2, 4, 16, 16), 0.0, 0.0, "binary_f32", {}),                       # default gammas
        ((3, 5, 7, 11),  1.0, 2.0, "binary_f32", {}),                       # ragged -> tail mask
        ((2, 4, 64, 64), 0.5, 1.5, "binary_f32", dict(max_tile_rows=32)),   # multi-step grid + sqrt powers
        ((2, 4, 16, 16), 2.0, 1.0, "binary_f32", dict(binary_target=True)), # single-log fast path
        ((2, 4, 16, 16), 0.0, 0.0, "soft",       {}),                       # soft targets
        ((2, 4, 16, 16), 0.0, 0.0, "binary_bf16", {}),                      # bf16 target pass-through
    ]

    for idx, (shape, gp, gn, tkind, kw) in enumerate(cases):
        k1, k2 = jax.random.split(jax.random.fold_in(key, idx))
        pred = jax.random.uniform(k1, shape, dtype=jnp.float32)
        if tkind == "soft":
            target = jax.random.uniform(k2, shape, dtype=jnp.float32)
        else:
            target = (jax.random.uniform(k2, shape) > 0.5).astype(jnp.float32)
            if tkind == "binary_bf16":
                target = target.astype(jnp.bfloat16)

        loss = jax.block_until_ready(asymmetric_loss(pred, target, gp, gn, **kw))
        ref = _reference_loss(pred, target, gp, gn)
        assert jnp.allclose(loss, ref, rtol=1e-5, atol=1e-6), (
            shape, gp, gn, tkind, float(loss), float(ref))

    print("KERNEL_OK")
</pallas_src>

<mosaic_0001>
module attributes {stable_mosaic.version = 11 : i64} {
  func.func @_asym_loss_kernel(%arg0: i32, %arg1: i32, %arg2: memref<16x128xf32, #tpu.memory_space<vmem>>, %arg3: memref<16x128xf32, #tpu.memory_space<vmem>>, %arg4: memref<1x8x128xf32, #tpu.memory_space<vmem>>, %arg5: memref<8x128xf32, #tpu.memory_space<vmem>>) attributes {dimension_semantics = [#tpu.dimension_semantics<arbitrary>, #tpu.dimension_semantics<arbitrary>], iteration_bounds = array<i64: 1, 1>, scalar_prefetch = 0 : i64, scratch_operands = 1 : i64, tpu.core_type = #tpu.core_type<tc>, window_params = [{transform_indices = @transform_0, window_bounds = array<i64: 16, 128>}, {transform_indices = @transform_1, window_bounds = array<i64: 16, 128>}, {transform_indices = @transform_2, window_bounds = array<i64: 1, 8, 128>}]} {
    %c0_i32 = arith.constant 0 : i32
    %0 = arith.cmpi eq, %arg1, %c0_i32 : i32
    %1 = arith.extui %0 : i1 to i32
    %c0_i32_0 = arith.constant 0 : i32
    %2 = arith.cmpi ne, %1, %c0_i32_0 : i32
    scf.if %2 {
      %cst_15 = arith.constant 0.000000e+00 : f32
      %27 = vector.broadcast %cst_15 : f32 to vector<8x128xf32>
      %c0_16 = arith.constant 0 : index
      %c0_17 = arith.constant 0 : index
      %28 = vector.load %arg5[%c0_16, %c0_17] : memref<8x128xf32, #tpu.memory_space<vmem>>, vector<8x128xf32>
      tpu.vector_store %arg5[%c0_16, %c0_17], %27 {strides = array<i32>} : memref<8x128xf32, #tpu.memory_space<vmem>>, vector<8x128xf32>,
    } else {
    }
    %c0 = arith.constant 0 : index
    %c0_1 = arith.constant 0 : index
    %3 = vector.load %arg2[%c0, %c0_1] : memref<16x128xf32, #tpu.memory_space<vmem>>, vector<16x128xf32>
    %c0_2 = arith.constant 0 : index
    %c0_3 = arith.constant 0 : index
    %4 = vector.load %arg3[%c0_2, %c0_3] : memref<16x128xf32, #tpu.memory_space<vmem>>, vector<16x128xf32>
    %cst = arith.constant 1.000000e+00 : f32
    %cst_4 = arith.constant 9.99999993E-9 : f32
    %5 = arith.subf %cst, %cst_4 : f32
    %cst_5 = arith.constant 9.99999993E-9 : f32
    %6 = vector.broadcast %cst_5 : f32 to vector<16x128xf32>
    %7 = arith.maximumf %6, %3 : vector<16x128xf32>
    %8 = vector.broadcast %5 : f32 to vector<16x128xf32>
    %9 = arith.minimumf %8, %7 : vector<16x128xf32>
    %10 = math.log %9 : vector<16x128xf32>
    %11 = arith.mulf %4, %10 : vector<16x128xf32>
    %cst_6 = arith.constant 1.000000e+00 : f32
    %12 = vector.broadcast %cst_6 : f32 to vector<16x128xf32>
    %13 = arith.subf %12, %4 : vector<16x128xf32>
    %cst_7 = arith.constant 1.000000e+00 : f32
    %14 = vector.broadcast %cst_7 : f32 to vector<16x128xf32>
    %15 = arith.subf %14, %9 : vector<16x128xf32>
    %16 = math.log %15 : vector<16x128xf32>
    %17 = arith.mulf %13, %16 : vector<16x128xf32>
    %18 = arith.addf %11, %17 : vector<16x128xf32>
    %c0_8 = arith.constant 0 : index
    %c0_9 = arith.constant 0 : index
    %19 = vector.load %arg5[%c0_8, %c0_9] : memref<8x128xf32, #tpu.memory_space<vmem>>, vector<8x128xf32>
    %20 = vector.shape_cast %18 : vector<16x128xf32> to vector<2x8x128xf32>
    %cst_10 = arith.constant dense<0.000000e+00> : vector<8x128xf32>
    %21 = vector.multi_reduction <add>, %20, %cst_10 [0] : vector<2x8x128xf32> to vector<8x128xf32>
    %22 = arith.addf %19, %21 : vector<8x128xf32>
    %c0_11 = arith.constant 0 : index
    %c0_12 = arith.constant 0 : index
    %23 = vector.load %arg5[%c0_11, %c0_12] : memref<8x128xf32, #tpu.memory_space<vmem>>, vector<8x128xf32>
    tpu.vector_store %arg5[%c0_11, %c0_12], %22 {strides = array<i32>} : memref<8x128xf32, #tpu.memory_space<vmem>>, vector<8x128xf32>,
    %c0_i32_13 = arith.constant 0 : i32
    %24 = arith.cmpi eq, %arg1, %c0_i32_13 : i32
    %25 = arith.extui %24 : i1 to i32
    %c0_i32_14 = arith.constant 0 : i32
    %26 = arith.cmpi ne, %25, %c0_i32_14 : i32
    scf.if %26 {
      %c0_15 = arith.constant 0 : index
      %c0_16 = arith.constant 0 : index
      %27 = vector.load %arg5[%c0_15, %c0_16] : memref<8x128xf32, #tpu.memory_space<vmem>>, vector<8x128xf32>
      %c0_17 = arith.constant 0 : index
      %c0_18 = arith.constant 0 : index
      %c0_19 = arith.constant 0 : index
      %28 = vector.load %arg4[%c0_17, %c0_18, %c0_19] : memref<1x8x128xf32, #tpu.memory_space<vmem>>, vector<1x8x128xf32>
      %29 = vector.shape_cast %28 : vector<1x8x128xf32> to vector<8x128xf32>
      %30 = vector.shape_cast %27 : vector<8x128xf32> to vector<1x8x128xf32>
      tpu.vector_store %arg4[%c0_17, %c0_18, %c0_19], %30 {strides = array<i32>} : memref<1x8x128xf32, #tpu.memory_space<vmem>>, vector<1x8x128xf32>,
    } else {
    }
    return
  }
  func.func @transform_0(%arg0: i32, %arg1: i32) -> (i32, i32) {
    %c1_i32 = arith.constant 1 : i32
    %0 = arith.muli %arg0, %c1_i32 : i32
    %1 = arith.addi %0, %arg1 : i32
    %c0_i32 = arith.constant 0 : i32
    %c0_i32_0 = arith.constant 0 : i32
    return %1, %c0_i32 : i32, i32
  }
  func.func @transform_1(%arg0: i32, %arg1: i32) -> (i32, i32) {
    %c1_i32 = arith.constant 1 : i32
    %0 = arith.muli %arg0, %c1_i32 : i32
    %1 = arith.addi %0, %arg1 : i32
    %c0_i32 = arith.constant 0 : i32
    %c0_i32_0 = arith.constant 0 : i32
    return %1, %c0_i32 : i32, i32
  }
  func.func @transform_2(%arg0: i32, %arg1: i32) -> (i32, i32, i32) {
    %c0_i32 = arith.constant 0 : i32
    %c0_i32_0 = arith.constant 0 : i32
    %c0_i32_1 = arith.constant 0 : i32
    return %arg0, %c0_i32, %c0_i32_0 : i32, i32, i32
  }
}

</mosaic_0001>

<llo_original>
// kernel: tpu_custom_call.1
$region0: #{tpu_custom_call.1}
  #allocation0 [shape = 'u32[]', space=smem, size = 0x4, offset = 0x4, fixed_abs, tag = 'smem constant byte address 0x4 - core index']
  #allocation1 [shape = 'u32[144,128]{1,0:T(1,128)}', space=vmem, size = 0x12000, scoped, tag = 'internal scratch']
  #allocation2 [shape = 'f32[8,128]{1,0:T(8,128)}', space=vmem, size = 0x1000, scoped, tag = 'scratch operand']
  %s0 = inlined_call_operand.hbm [shape: f32[16,128], index: 0, kind: input, shape index: {}]
  %s1 = inlined_call_operand.hbm [shape: f32[16,128], index: 1, kind: input, shape index: {}]
  %s2 = inlined_call_operand.hbm [shape: f32[1,8,128], index: 2, kind: output, shape index: {}]
  %s3 = sld [smem:[#allocation0]]
  $region34: #{tpu_custom_call.1} parent=0
    _
  %s5 = ssub.s32 1, %s3
  %s6 = scalar_select 0, %s5, %s3
  $region1: #{tpu_custom_call.1} parent=0
    #allocation3 [shape = 'u8[8192]{0}', space=vmem, size = 0x2000, scoped, tag = 'input window, operand 0, single buffered']
    #allocation4 [shape = 's32[1]{0}', space=sflag, size = 0x4, scoped, tag = 'scoped memory for tpu_custom_call.1']
    #allocation5 [shape = 's32[1]{0}', space=sflag, size = 0x4, scoped, tag = 'scoped memory for tpu_custom_call.1']
    #allocation6 [shape = 'u8[8192]{0}', space=vmem, size = 0x2000, scoped, tag = 'input window, operand 1, single buffered']
    #allocation7 [shape = 's32[1]{0}', space=sflag, size = 0x4, scoped, tag = 'scoped memory for tpu_custom_call.1']
    #allocation8 [shape = 'u8[4096]{0}', space=vmem, size = 0x1000, scoped, tag = 'output window, operand 0, single buffered']
    %7 = vsyncpa [#allocation4], 0
    %8 = vsyncpa [#allocation7], 0
    %9 = vsyncpa [#allocation5], 0
    // Predicated region
    $region2: #{tpu_custom_call.1} parent=1 // pred_check
      _
    $region3: #{tpu_custom_call.1} parent=1 // pred_check_branch
      %11 = sbr.rel (0) target = $region5
    $region4: #{tpu_custom_call.1} parent=1 // pred_region
      %s12 = sadd.s32 0, 0
      %s13 = smul.u32 2, %s12
      %s15 = ssub.s32 256, 256
      %16 = vsyncadd [#allocation4], %s15
      %s17 = smul.addr %s13, 128
      %s18 = scalar_lea.hbm %s0, %s17
      %s19 = sshll.u32 [#allocation3], 4
      %s20 = int_to_ptr.vmem [resolvable:$true] %s19
      %25 = dma.hbm_to_vmem [thread:$0]  %s18, 256, %s20, [#allocation4], 128, 128, 8
    $region5: #{tpu_custom_call.1} parent=1 // pred_fallthru
      _
    // Predicated region
    $region6: #{tpu_custom_call.1} parent=1 // pred_check
      _
    $region7: #{tpu_custom_call.1} parent=1 // pred_check_branch
      %27 = sbr.rel (0) target = $region9
    $region8: #{tpu_custom_call.1} parent=1 // pred_region
      %s28 = sadd.s32 0, 0
      %s29 = smul.u32 2, %s28
      %s31 = ssub.s32 256, 256
      %32 = vsyncadd [#allocation7], %s31
      %s33 = smul.addr %s29, 128
      %s34 = scalar_lea.hbm %s1, %s33
      %s35 = sshll.u32 [#allocation6], 4
      %s36 = int_to_ptr.vmem [resolvable:$true] %s35
      %41 = dma.hbm_to_vmem [thread:$0]  %s34, 256, %s36, [#allocation7], 128, 128, 8
    $region9: #{tpu_custom_call.1} parent=1 // pred_fallthru
      _
    // Predicated region
    $region10: #{tpu_custom_call.1} parent=1 // pred_check
      _
    $region11: #{tpu_custom_call.1} parent=1 // pred_check_branch
      %43 = sbr.rel (0) target = $region13
    $region12: #{tpu_custom_call.1} parent=1 // pred_region
      %44 = dma.done [#allocation4], 256
    $region13: #{tpu_custom_call.1} parent=1 // pred_fallthru
      _
    // Predicated region
    $region14: #{tpu_custom_call.1} parent=1 // pred_check
      _
    $region15: #{tpu_custom_call.1} parent=1 // pred_check_branch
      %46 = sbr.rel (0) target = $region17
    $region16: #{tpu_custom_call.1} parent=1 // pred_region
      %47 = dma.done [#allocation7], 256
    $region17: #{tpu_custom_call.1} parent=1 // pred_fallthru
      _
    %s48 = sadd.s32 0, 0
    %s49 = smul.u32 2, %s48
    %s50 = sadd.s32 0, 0
    %s51 = smul.u32 2, %s50
    %p52 = scmp.eq.s32.totalorder 0, 0
    // Predicated region
    $region18: #{tpu_custom_call.1} parent=1 // pred_check
      %p53 = pneg %p52
    $region19: #{tpu_custom_call.1} parent=1 // pred_check_branch
      %55 = sbr.rel (%p53) target = $region21
    $region20: #{tpu_custom_call.1} parent=1 // pred_region
      %56 = vst [vmem:[#allocation2] sm:$0xff] 0.0
    $region21: #{tpu_custom_call.1} parent=1 // pred_fallthru
      _
    %v57 = vld [vmem:[#allocation3] sm:$0xff]
    %v58 = vld [vmem:[#allocation3 + $0x8] sm:$0xff]
    %v59 = vld [vmem:[#allocation6] sm:$0xff]
    %v60 = vld [vmem:[#allocation6 + $0x8] sm:$0xff]
    %v61 = vmax.f32 %v57, 1e-08
    %v62 = vmax.f32 %v58, 1e-08
    %v63 = vmin.f32 %v61, 1.0
    %v64 = vmin.f32 %v62, 1.0
    %v65 = vlog2.pop %v63
    %v66 = vmul.f32 %v65, 0.6931472
    %v67 = vlog2.pop %v64
    %v68 = vmul.f32 %v67, 0.6931472
    %v69 = vmul.f32 %v59, %v66
    %v70 = vmul.f32 %v60, %v68
    %v71 = vsub.f32 1.0, %v59
    %v72 = vsub.f32 1.0, %v60
    %v73 = vsub.f32 1.0, %v63
    %v74 = vsub.f32 1.0, %v64
    %v75 = vlog2.pop %v73
    %v76 = vmul.f32 %v75, 0.6931472
    %v77 = vlog2.pop %v74
    %v78 = vmul.f32 %v77, 0.6931472
    %v79 = vmul.f32 %v71, %v76
    %v80 = vmul.f32 %v72, %v78
    %v81 = vadd.f32 %v69, %v79
    %v82 = vadd.f32 %v70, %v80
    %v83 = vld [vmem:[#allocation2] sm:$0xff]
    %v84 = vadd.f32 %v81, %v82
    %v85 = vadd.f32 %v83, %v84
    %86 = vst [vmem:[#allocation2] sm:$0xff] %v85
    // Predicated region
    $region22: #{tpu_custom_call.1} parent=1 // pred_check
      %p87 = pneg %p52
    $region23: #{tpu_custom_call.1} parent=1 // pred_check_branch
      %89 = sbr.rel (%p87) target = $region25
    $region24: #{tpu_custom_call.1} parent=1 // pred_region
      %v90 = vld [vmem:[#allocation2] sm:$0xff]
      %91 = vst [vmem:[#allocation8] sm:$0xff] %v90
    $region25: #{tpu_custom_call.1} parent=1 // pred_fallthru
      _
    // Predicated region
    $region26: #{tpu_custom_call.1} parent=1 // pred_check
      _
    $region27: #{tpu_custom_call.1} parent=1 // pred_check_branch
      %93 = sbr.rel (0) target = $region29
    $region28: #{tpu_custom_call.1} parent=1 // pred_region
      %s95 = ssub.s32 128, 128
      %96 = vsyncadd [#allocation5], %s95
      %s98 = sshll.u32 [#allocation8], 4
      %s99 = int_to_ptr.vmem [resolvable:$true] %s98
      %101 = dma.vmem_to_hbm [thread:$0]  %s99, 128, %s2, [#allocation5]
    $region29: #{tpu_custom_call.1} parent=1 // pred_fallthru
      _
    // Predicated region
    $region30: #{tpu_custom_call.1} parent=1 // pred_check
      _
    $region31: #{tpu_custom_call.1} parent=1 // pred_check_branch
      %103 = sbr.rel (0) target = $region33
    $region32: #{tpu_custom_call.1} parent=1 // pred_region
      %104 = dma.done [#allocation5], 128
    $region33: #{tpu_custom_call.1} parent=1 // pred_fallthru
      _
    %105 = vsyncpa [#allocation4], 1
    %106 = vsyncpa [#allocation7], 1
    %107 = vsyncpa [#allocation5], 1

</llo_original>
